<compile_context>
chip_gen: v7x
topology: tpu7x:2x2x1
jax: 0.10.0
libtpu: 0.0.40
codegen_flags: <defaults>
</compile_context>

<pallas_src>
import jax
import jax.numpy as jnp
from jax.experimental import pallas as pl
from jax.experimental.pallas import tpu as pltpu


def attention_kernel(hidden_ref, enc_ref, wh_ref, we_ref, b_ref, v_ref, out_ref):
    # hidden_ref: (TB, Ddec)     compute dtype   decoder hidden state (batch tile)
    # enc_ref:    (TB, S, E2)    compute dtype   encoder outputs, batch-major
    # wh_ref:     (Ddec, Ddec)   compute dtype   = W_attn[:, :Ddec].T
    # we_ref:     (E2, Ddec)     compute dtype   = W_attn[:, Ddec:].T
    # b_ref:      (1, Ddec)      f32
    # v_ref:      (1, Ddec)      f32             v as a row -> VPU multiply + reduce
    # out_ref:    (TB, S)        f32             softmax over S (lane axis)
    TB, S, E2 = enc_ref.shape
    Ddec = wh_ref.shape[0]

    h = hidden_ref[...]
    wh = wh_ref[...]
    we = we_ref[...]
    b = b_ref[...]
    v = v_ref[...]

    # Full-precision MXU passes only when the streamed dtype is f32 (validation
    # path); bf16 streaming uses the native single-pass bf16 MXU.
    prec = jax.lax.Precision.HIGHEST if h.dtype == jnp.float32 else None

    # Hidden projection with the bias folded in: (TB, Ddec) f32.
    h_proj = jnp.dot(h, wh, preferred_element_type=jnp.float32, precision=prec) + b

    # Encoder projection. Collapsing (TB, S) keeps E2 on the lane axis; the
    # reshape is layout-preserving when S is a multiple of 8 (sublane dim).
    eo2d = enc_ref[...].reshape(TB * S, E2)
    e_proj = jnp.dot(eo2d, we, preferred_element_type=jnp.float32, precision=prec)
    e_proj = e_proj.reshape(TB, S, Ddec)

    # energy = tanh(enc_part + hidden_part + bias)   (TB, S, Ddec)   (EUP tanh)
    energy = jnp.tanh(e_proj + h_proj[:, None, :])

    # score = energy . v as VPU multiply + last-axis reduce: directly (TB, S),
    # batch-major and lane-dense -> no transpose needed.
    score = jnp.sum(energy * v[None, :, :], axis=-1)

    # Softmax over src_len (last axis). Padded rows of a partial last block may
    # hold garbage internally but the masked output store keeps the result exact.
    m = jnp.max(score, axis=-1, keepdims=True)
    e = jnp.exp(score - m)
    denom = jnp.sum(e, axis=-1, keepdims=True)
    # Exact divide (not pl.reciprocal(approx=True)): rows must sum to 1 tightly.
    out_ref[...] = e / denom


def _round_up(x, m):
    return ((x + m - 1) // m) * m


def _choose_batch_tile(B, S, E2, Ddec, vmem_budget_bytes, stream_elem_bytes,
                       tb_cap, min_blocks):
    """Largest batch tile (multiple of 8, <= tb_cap) whose working set fits the budget."""
    if B <= 8:
        return B

    def block_bytes(tb):
        enc = 2 * tb * S * E2 * stream_elem_bytes        # double-buffered encoder tile
        hid = 2 * tb * Ddec * stream_elem_bytes          # double-buffered hidden tile
        out = 2 * tb * S * 4                             # double-buffered output tile
        wts = 2 * (Ddec * Ddec + E2 * Ddec) * stream_elem_bytes + 4 * Ddec * 4
        # e_proj / energy / score / softmax temporaries / h_proj (all f32)
        interm = (2 * tb * S * Ddec + 4 * tb * S + tb * Ddec) * 4
        return enc + hid + out + wts + interm

    tb_max = min(tb_cap, _round_up(B, 8))
    if min_blocks > 1:
        # Guarantee >= min_blocks grid steps (megacore sharding + DMA/compute overlap).
        tb_max = min(tb_max, _round_up((B + min_blocks - 1) // min_blocks, 8))
    tb = max(8, (tb_max // 8) * 8)
    while tb > 8 and block_bytes(tb) > vmem_budget_bytes:
        tb -= 8
    return tb


def _vmem_config():
    """Generation-aware VMEM budget / limit / tile caps (conservative fallback)."""
    try:
        info = pltpu.get_tpu_info()
        cap = int(getattr(info, "vmem_capacity_bytes", 64 << 20))
    except Exception:
        cap = 64 << 20
    if cap >= (96 << 20):
        # v5e / v6e: 128 MiB physical VMEM -> big tiles, raised scoped limit.
        return dict(budget=64 << 20, limit=96 << 20, tb_cap=512, min_blocks=1)
    # v7x-like: 64 MiB physical -> headroom for double-buffers + compiler scratch,
    # and force >=2 grid blocks so both TensorCores are used.
    return dict(budget=24 << 20, limit=48 << 20, tb_cap=256, min_blocks=2)


def attention_forward(hidden, encoder_outputs, w_attn, b_attn, v_w,
                      *, compute_dtype=jnp.bfloat16, vmem_budget_bytes=None):
    """
    hidden:          (B, Ddec)          float32
    encoder_outputs: (S, B, E2)         float32   (PyTorch seq-first convention)
    w_attn:          (Ddec, E2 + Ddec)  nn.Linear(enc_hid*2 + dec_hid, dec_hid) weight
    b_attn:          (Ddec,)            its bias
    v_w:             (1, Ddec)          nn.Linear(dec_hid, 1, bias=False) weight
    compute_dtype:   streaming dtype for encoder/hidden/weights (bf16 default;
                     softmax and accumulation stay f32)
    returns:         (B, S)             softmax attention weights over src_len
    """
    S, B, E2 = encoder_outputs.shape
    Ddec = hidden.shape[1]

    cfg = _vmem_config()
    if vmem_budget_bytes is None:
        vmem_budget_bytes = cfg["budget"]

    stream_elem = jnp.dtype(compute_dtype).itemsize

    # One-time relayout to batch-major + streaming dtype. In a real decoder loop
    # this is hoisted out and amortized across all decoder steps.
    enc_bm = jnp.transpose(encoder_outputs, (1, 0, 2)).astype(compute_dtype)  # (B, S, E2)
    h_c = hidden.astype(compute_dtype)

    # Tiny weight-only glue (cat order in PyTorch is [hidden, encoder]).
    wh_t = jnp.transpose(w_attn[:, :Ddec]).astype(compute_dtype)   # (Ddec, Ddec)
    we_t = jnp.transpose(w_attn[:, Ddec:]).astype(compute_dtype)   # (E2, Ddec)
    b2d = b_attn.reshape(1, Ddec).astype(jnp.float32)              # (1, Ddec)
    v_row = v_w.reshape(1, Ddec).astype(jnp.float32)               # (1, Ddec)

    TB = _choose_batch_tile(B, S, E2, Ddec, vmem_budget_bytes, stream_elem,
                            tb_cap=cfg["tb_cap"], min_blocks=cfg["min_blocks"])
    grid = (pl.cdiv(B, TB),)

    return pl.pallas_call(
        attention_kernel,
        out_shape=jax.ShapeDtypeStruct((B, S), jnp.float32),
        grid=grid,
        in_specs=[
            pl.BlockSpec((TB, Ddec), lambda i: (i, 0)),        # hidden (batch tile)
            pl.BlockSpec((TB, S, E2), lambda i: (i, 0, 0)),    # encoder, batch-major (contiguous DMA)
            pl.BlockSpec((Ddec, Ddec), lambda i: (0, 0)),      # Wh
            pl.BlockSpec((E2, Ddec), lambda i: (0, 0)),        # We
            pl.BlockSpec((1, Ddec), lambda i: (0, 0)),         # bias
            pl.BlockSpec((1, Ddec), lambda i: (0, 0)),         # v (row)
        ],
        out_specs=pl.BlockSpec((TB, S), lambda i: (i, 0)),
        compiler_params=pltpu.CompilerParams(
            dimension_semantics=("parallel",),                 # shard over 2 TCs on v7x
            vmem_limit_bytes=cfg["limit"],
        ),
    )(h_c, enc_bm, wh_t, we_t, b2d, v_row)


def reference_forward(hidden, encoder_outputs, w_attn, b_attn, v_w):
    """Pure-JAX mirror of the PyTorch forward for validation."""
    S, B, _ = encoder_outputs.shape
    h_rep = jnp.repeat(hidden[:, None, :], S, axis=1)            # (B, S, Ddec)
    eo = jnp.transpose(encoder_outputs, (1, 0, 2))               # (B, S, E2)
    cat = jnp.concatenate([h_rep, eo], axis=2)                   # (B, S, Ddec+E2)
    energy = jnp.tanh(
        jnp.einsum("bsk,dk->bsd", cat, w_attn,
                   precision=jax.lax.Precision.HIGHEST) + b_attn)
    attention = jnp.einsum("bsd,od->bso", energy, v_w,
                           precision=jax.lax.Precision.HIGHEST)[..., 0]   # (B, S)
    return jax.nn.softmax(attention, axis=1)


if __name__ == "__main__":
    # Small shapes consistent with the module.
    enc_hid_dim = 16
    dec_hid_dim = 32
    batch = 2
    src_len = 8
    e2 = enc_hid_dim * 2          # 32
    in_feat = e2 + dec_hid_dim    # 64

    key = jax.random.PRNGKey(0)
    k_h, k_e, k_w, k_b, k_v = jax.random.split(key, 5)

    hidden = jax.random.normal(k_h, (batch, dec_hid_dim), dtype=jnp.float32)
    encoder_outputs = jax.random.normal(k_e, (src_len, batch, e2), dtype=jnp.float32)

    # Deterministic parameter init (PyTorch nn.Linear-style uniform +/- 1/sqrt(fan_in)).
    bound_attn = 1.0 / jnp.sqrt(jnp.float32(in_feat))
    w_attn = jax.random.uniform(k_w, (dec_hid_dim, in_feat), jnp.float32,
                                -bound_attn, bound_attn)
    b_attn = jax.random.uniform(k_b, (dec_hid_dim,), jnp.float32,
                                -bound_attn, bound_attn)
    bound_v = 1.0 / jnp.sqrt(jnp.float32(dec_hid_dim))
    v_w = jax.random.uniform(k_v, (1, dec_hid_dim), jnp.float32,
                             -bound_v, bound_v)

    ref = reference_forward(hidden, encoder_outputs, w_attn, b_attn, v_w)

    # f32 streaming path: tight check against the reference.
    out_f32 = attention_forward(hidden, encoder_outputs, w_attn, b_attn, v_w,
                                compute_dtype=jnp.float32)
    out_f32 = jax.block_until_ready(out_f32)
    assert out_f32.shape == (batch, src_len)
    assert jnp.allclose(jnp.sum(out_f32, axis=1), 1.0, atol=1e-5)
    assert jnp.allclose(out_f32, ref, atol=1e-4, rtol=1e-4)

    # bf16 streaming path (default, ~2x less HBM traffic): looser tolerance,
    # but rows still sum to 1 tightly because the softmax stays f32.
    out_bf16 = attention_forward(hidden, encoder_outputs, w_attn, b_attn, v_w)
    out_bf16 = jax.block_until_ready(out_bf16)
    assert out_bf16.shape == (batch, src_len)
    assert jnp.allclose(jnp.sum(out_bf16, axis=1), 1.0, atol=1e-5)
    assert jnp.allclose(out_bf16, ref, atol=3e-2, rtol=3e-2)

    print("KERNEL_OK")
</pallas_src>

<mosaic_0001>
module attributes {stable_mosaic.version = 11 : i64} {
  func.func @attention_kernel(%arg0: i32, %arg1: memref<2x32xf32, #tpu.memory_space<vmem>>, %arg2: memref<2x8x32xf32, #tpu.memory_space<vmem>>, %arg3: memref<32x32xf32, #tpu.memory_space<vmem>>, %arg4: memref<32x32xf32, #tpu.memory_space<vmem>>, %arg5: memref<1x32xf32, #tpu.memory_space<vmem>>, %arg6: memref<1x32xf32, #tpu.memory_space<vmem>>, %arg7: memref<2x8xf32, #tpu.memory_space<vmem>>) attributes {dimension_semantics = [#tpu.dimension_semantics<parallel>], iteration_bounds = array<i64: 1>, scalar_prefetch = 0 : i64, scratch_operands = 0 : i64, tpu.core_type = #tpu.core_type<tc>, window_params = [{transform_indices = @transform_0, window_bounds = array<i64: 2, 32>}, {transform_indices = @transform_1, window_bounds = array<i64: 2, 8, 32>}, {pipeline_mode = #tpu.pipeline_mode<synchronous>, transform_indices = @transform_2, window_bounds = array<i64: 32, 32>}, {pipeline_mode = #tpu.pipeline_mode<synchronous>, transform_indices = @transform_3, window_bounds = array<i64: 32, 32>}, {pipeline_mode = #tpu.pipeline_mode<synchronous>, transform_indices = @transform_4, window_bounds = array<i64: 1, 32>}, {pipeline_mode = #tpu.pipeline_mode<synchronous>, transform_indices = @transform_5, window_bounds = array<i64: 1, 32>}, {transform_indices = @transform_6, window_bounds = array<i64: 2, 8>}]} {
    %c0 = arith.constant 0 : index
    %c0_0 = arith.constant 0 : index
    %0 = vector.load %arg1[%c0, %c0_0] : memref<2x32xf32, #tpu.memory_space<vmem>>, vector<2x32xf32>
    %c0_1 = arith.constant 0 : index
    %c0_2 = arith.constant 0 : index
    %1 = vector.load %arg3[%c0_1, %c0_2] : memref<32x32xf32, #tpu.memory_space<vmem>>, vector<32x32xf32>
    %c0_3 = arith.constant 0 : index
    %c0_4 = arith.constant 0 : index
    %2 = vector.load %arg4[%c0_3, %c0_4] : memref<32x32xf32, #tpu.memory_space<vmem>>, vector<32x32xf32>
    %c0_5 = arith.constant 0 : index
    %c0_6 = arith.constant 0 : index
    %3 = vector.load %arg5[%c0_5, %c0_6] : memref<1x32xf32, #tpu.memory_space<vmem>>, vector<1x32xf32>
    %c0_7 = arith.constant 0 : index
    %c0_8 = arith.constant 0 : index
    %4 = vector.load %arg6[%c0_7, %c0_8] : memref<1x32xf32, #tpu.memory_space<vmem>>, vector<1x32xf32>
    %cst = arith.constant dense<0.000000e+00> : vector<2x32xf32>
    %5 = tpu.matmul %0, %1, %cst {dimension_numbers = #tpu.dot_dimension_numbers<[1], [0], [0], [1], [0, 0, 1, 1], [], []>, precision = #tpu.contract_precision<fp32>} : vector<2x32xf32>, vector<32x32xf32>, vector<2x32xf32> -> vector<2x32xf32>
    %6 = vector.broadcast %3 : vector<1x32xf32> to vector<2x32xf32>
    %7 = arith.addf %5, %6 : vector<2x32xf32>
    %c0_9 = arith.constant 0 : index
    %c0_10 = arith.constant 0 : index
    %c0_11 = arith.constant 0 : index
    %8 = vector.load %arg2[%c0_9, %c0_10, %c0_11] : memref<2x8x32xf32, #tpu.memory_space<vmem>>, vector<2x8x32xf32>
    %9 = vector.shape_cast %8 : vector<2x8x32xf32> to vector<16x32xf32>
    %cst_12 = arith.constant dense<0.000000e+00> : vector<16x32xf32>
    %10 = tpu.matmul %9, %2, %cst_12 {dimension_numbers = #tpu.dot_dimension_numbers<[1], [0], [0], [1], [0, 0, 1, 1], [], []>, precision = #tpu.contract_precision<fp32>} : vector<16x32xf32>, vector<32x32xf32>, vector<16x32xf32> -> vector<16x32xf32>
    %11 = vector.shape_cast %10 : vector<16x32xf32> to vector<2x8x32xf32>
    %12 = vector.shape_cast %7 : vector<2x32xf32> to vector<2x1x32xf32>
    %13 = vector.broadcast %12 : vector<2x1x32xf32> to vector<2x8x32xf32>
    %14 = arith.addf %11, %13 : vector<2x8x32xf32>
    %15 = math.tanh %14 : vector<2x8x32xf32>
    %16 = vector.shape_cast %4 : vector<1x32xf32> to vector<1x1x32xf32>
    %17 = vector.broadcast %16 : vector<1x1x32xf32> to vector<2x8x32xf32>
    %18 = arith.mulf %15, %17 : vector<2x8x32xf32>
    %cst_13 = arith.constant dense<0.000000e+00> : vector<2x8xf32>
    %19 = vector.multi_reduction <add>, %18, %cst_13 [2] : vector<2x8x32xf32> to vector<2x8xf32>
    %cst_14 = arith.constant dense<0xFF800000> : vector<2xf32>
    %20 = vector.multi_reduction <maximumf>, %19, %cst_14 [1] : vector<2x8xf32> to vector<2xf32>
    %21 = vector.shape_cast %20 : vector<2xf32> to vector<2x1xf32>
    %22 = vector.broadcast %21 : vector<2x1xf32> to vector<2x8xf32>
    %23 = arith.subf %19, %22 : vector<2x8xf32>
    %24 = math.exp %23 : vector<2x8xf32>
    %cst_15 = arith.constant dense<0.000000e+00> : vector<2xf32>
    %25 = vector.multi_reduction <add>, %24, %cst_15 [1] : vector<2x8xf32> to vector<2xf32>
    %26 = vector.shape_cast %25 : vector<2xf32> to vector<2x1xf32>
    %27 = vector.broadcast %26 : vector<2x1xf32> to vector<2x8xf32>
    %28 = arith.divf %24, %27 : vector<2x8xf32>
    %c0_16 = arith.constant 0 : index
    %c0_17 = arith.constant 0 : index
    %29 = vector.load %arg7[%c0_16, %c0_17] : memref<2x8xf32, #tpu.memory_space<vmem>>, vector<2x8xf32>
    tpu.vector_store %arg7[%c0_16, %c0_17], %28 {strides = array<i32>} : memref<2x8xf32, #tpu.memory_space<vmem>>, vector<2x8xf32>,
    return
  }
  func.func @transform_0(%arg0: i32) -> (i32, i32) {
    %c0_i32 = arith.constant 0 : i32
    %c0_i32_0 = arith.constant 0 : i32
    return %arg0, %c0_i32 : i32, i32
  }
  func.func @transform_1(%arg0: i32) -> (i32, i32, i32) {
    %c0_i32 = arith.constant 0 : i32
    %c0_i32_0 = arith.constant 0 : i32
    %c0_i32_1 = arith.constant 0 : i32
    return %arg0, %c0_i32, %c0_i32_0 : i32, i32, i32
  }
  func.func @transform_2(%arg0: i32) -> (i32, i32) {
    %c0_i32 = arith.constant 0 : i32
    %c0_i32_0 = arith.constant 0 : i32
    %c0_i32_1 = arith.constant 0 : i32
    return %c0_i32, %c0_i32_0 : i32, i32
  }
  func.func @transform_3(%arg0: i32) -> (i32, i32) {
    %c0_i32 = arith.constant 0 : i32
    %c0_i32_0 = arith.constant 0 : i32
    %c0_i32_1 = arith.constant 0 : i32
    return %c0_i32, %c0_i32_0 : i32, i32
  }
  func.func @transform_4(%arg0: i32) -> (i32, i32) {
    %c0_i32 = arith.constant 0 : i32
    %c0_i32_0 = arith.constant 0 : i32
    %c0_i32_1 = arith.constant 0 : i32
    return %c0_i32, %c0_i32_0 : i32, i32
  }
  func.func @transform_5(%arg0: i32) -> (i32, i32) {
    %c0_i32 = arith.constant 0 : i32
    %c0_i32_0 = arith.constant 0 : i32
    %c0_i32_1 = arith.constant 0 : i32
    return %c0_i32, %c0_i32_0 : i32, i32
  }
  func.func @transform_6(%arg0: i32) -> (i32, i32) {
    %c0_i32 = arith.constant 0 : i32
    %c0_i32_0 = arith.constant 0 : i32
    return %arg0, %c0_i32 : i32, i32
  }
}

</mosaic_0001>

<llo_original>
// kernel: tpu_custom_call.1
$region0: #{tpu_custom_call.1}
  #allocation0 [shape = 'u32[]', space=smem, size = 0x4, offset = 0x4, fixed_abs, tag = 'smem constant byte address 0x4 - core index']
  #allocation1 [shape = 'u32[144,128]{1,0:T(1,128)}', space=vmem, size = 0x12000, scoped, tag = 'internal scratch']
  %s0 = inlined_call_operand.hbm [shape: f32[2,32], index: 0, kind: input, shape index: {}]
  %s1 = inlined_call_operand.hbm [shape: f32[2,8,32], index: 1, kind: input, shape index: {}]
  %s2 = inlined_call_operand.hbm [shape: f32[32,32], index: 2, kind: input, shape index: {}]
  %s3 = inlined_call_operand.hbm [shape: f32[32,32], index: 3, kind: input, shape index: {}]
  %s4 = inlined_call_operand.vmem [shape: f32[1,32], index: 4, kind: input, shape index: {}]
  %s5 = inlined_call_operand.vmem [shape: f32[1,32], index: 5, kind: input, shape index: {}]
  %s6 = inlined_call_operand.hbm [shape: f32[2,8], index: 6, kind: output, shape index: {}]
  %s7 = sld [smem:[#allocation0]]
  $region50: #{tpu_custom_call.1} parent=0
    _
  %s9 = ssub.s32 1, %s7
  %s10 = scalar_select 0, %s9, %s7
  $region1: #{tpu_custom_call.1} parent=0
    #allocation2 [shape = 'u8[1024]{0}', space=vmem, size = 0x400, scoped, tag = 'input window, operand 0, single buffered']
    #allocation3 [shape = 's32[1]{0}', space=sflag, size = 0x4, scoped, tag = 'scoped memory for tpu_custom_call.1']
    #allocation4 [shape = 's32[1]{0}', space=sflag, size = 0x4, scoped, tag = 'scoped memory for tpu_custom_call.1']
    #allocation5 [shape = 'u8[8192]{0}', space=vmem, size = 0x2000, scoped, tag = 'input window, operand 1, single buffered']
    #allocation6 [shape = 's32[1]{0}', space=sflag, size = 0x4, scoped, tag = 'scoped memory for tpu_custom_call.1']
    #allocation7 [shape = 'u8[16384]{0}', space=vmem, size = 0x4000, scoped, tag = 'input window, operand 2, single buffered']
    #allocation8 [shape = 'u8[16384]{0}', space=vmem, size = 0x4000, scoped, tag = 'input window, operand 3, single buffered']
    #allocation9 [shape = 's32[1]{0}', space=sflag, size = 0x4, scoped, tag = 'scoped memory for tpu_custom_call.1']
    #allocation10 [shape = 'u8[1024]{0}', space=vmem, size = 0x400, scoped, tag = 'output window, operand 0, single buffered']
    %11 = vsyncpa [#allocation3], 0
    %12 = vsyncpa [#allocation6], 0
    %13 = vsyncpa [#allocation9], 0
    %14 = vsyncpa [#allocation4], 0
    // Predicated region
    $region2: #{tpu_custom_call.1} parent=1 // pred_check
      _
    $region3: #{tpu_custom_call.1} parent=1 // pred_check_branch
      %16 = sbr.rel (0) target = $region5
    $region4: #{tpu_custom_call.1} parent=1 // pred_region
      %s18 = ssub.s32 32, 32
      %19 = vsyncadd [#allocation3], %s18
      %s21 = sshll.u32 [#allocation2], 4
      %s22 = int_to_ptr.vmem [resolvable:$true] %s21
      %24 = dma.hbm_to_vmem [thread:$0]  %s0, 32, %s22, [#allocation3]
    $region5: #{tpu_custom_call.1} parent=1 // pred_fallthru
      _
    // Predicated region
    $region6: #{tpu_custom_call.1} parent=1 // pred_check
      _
    $region7: #{tpu_custom_call.1} parent=1 // pred_check_branch
      %26 = sbr.rel (0) target = $region9
    $region8: #{tpu_custom_call.1} parent=1 // pred_region
      %s28 = ssub.s32 256, 256
      %29 = vsyncadd [#allocation6], %s28
      %s30 = sshll.u32 [#allocation5], 4
      %s31 = int_to_ptr.vmem [resolvable:$true] %s30
      %36 = dma.hbm_to_vmem [thread:$0]  %s1, 256, %s31, [#allocation6], 128, 128, 8
    $region9: #{tpu_custom_call.1} parent=1 // pred_fallthru
      _
    // Predicated region
    $region10: #{tpu_custom_call.1} parent=1 // pred_check
      _
    $region11: #{tpu_custom_call.1} parent=1 // pred_check_branch
      %38 = sbr.rel (0) target = $region13
    $region12: #{tpu_custom_call.1} parent=1 // pred_region
      %s40 = ssub.s32 512, 512
      %41 = vsyncadd [#allocation6], %s40
      %s42 = sshll.u32 [#allocation7], 4
      %s43 = int_to_ptr.vmem [resolvable:$true] %s42
      %48 = dma.hbm_to_vmem [thread:$0]  %s2, 512, %s43, [#allocation6], 128, 128, 8
    $region13: #{tpu_custom_call.1} parent=1 // pred_fallthru
      _
    // Predicated region
    $region14: #{tpu_custom_call.1} parent=1 // pred_check
      _
    $region15: #{tpu_custom_call.1} parent=1 // pred_check_branch
      %50 = sbr.rel (0) target = $region17
    $region16: #{tpu_custom_call.1} parent=1 // pred_region
      %s52 = ssub.s32 512, 512
      %53 = vsyncadd [#allocation9], %s52
      %s54 = sshll.u32 [#allocation8], 4
      %s55 = int_to_ptr.vmem [resolvable:$true] %s54
      %60 = dma.hbm_to_vmem [thread:$0]  %s3, 512, %s55, [#allocation9], 128, 128, 8
    $region17: #{tpu_custom_call.1} parent=1 // pred_fallthru
      _
    // Predicated region
    $region18: #{tpu_custom_call.1} parent=1 // pred_check
      _
    $region19: #{tpu_custom_call.1} parent=1 // pred_check_branch
      %62 = sbr.rel (0) target = $region21
    $region20: #{tpu_custom_call.1} parent=1 // pred_region
      _
    $region21: #{tpu_custom_call.1} parent=1 // pred_fallthru
      _
    // Predicated region
    $region22: #{tpu_custom_call.1} parent=1 // pred_check
      _
    $region23: #{tpu_custom_call.1} parent=1 // pred_check_branch
      %64 = sbr.rel (0) target = $region25
    $region24: #{tpu_custom_call.1} parent=1 // pred_region
      _
    $region25: #{tpu_custom_call.1} parent=1 // pred_fallthru
      _
    // Predicated region
    $region26: #{tpu_custom_call.1} parent=1 // pred_check
      _
    $region27: #{tpu_custom_call.1} parent=1 // pred_check_branch
      %66 = sbr.rel (0) target = $region29
    $region28: #{tpu_custom_call.1} parent=1 // pred_region
      %67 = dma.done [#allocation3], 32
    $region29: #{tpu_custom_call.1} parent=1 // pred_fallthru
      _
    // Predicated region
    $region30: #{tpu_custom_call.1} parent=1 // pred_check
      _
    $region31: #{tpu_custom_call.1} parent=1 // pred_check_branch
      %69 = sbr.rel (0) target = $region33
    $region32: #{tpu_custom_call.1} parent=1 // pred_region
      %70 = dma.done [#allocation6], 256
    $region33: #{tpu_custom_call.1} parent=1 // pred_fallthru
      _
    // Predicated region
    $region34: #{tpu_custom_call.1} parent=1 // pred_check
      _
    $region35: #{tpu_custom_call.1} parent=1 // pred_check_branch
      %72 = sbr.rel (0) target = $region37
    $region36: #{tpu_custom_call.1} parent=1 // pred_region
      %73 = dma.done [#allocation6], 512
    $region37: #{tpu_custom_call.1} parent=1 // pred_fallthru
      _
    // Predicated region
    $region38: #{tpu_custom_call.1} parent=1 // pred_check
      _
    $region39: #{tpu_custom_call.1} parent=1 // pred_check_branch
      %75 = sbr.rel (0) target = $region41
    $region40: #{tpu_custom_call.1} parent=1 // pred_region
      %76 = dma.done [#allocation9], 512
    $region41: #{tpu_custom_call.1} parent=1 // pred_fallthru
      _
    %v77 = vld [vmem:[#allocation2] sm:$0x3]
    %v78 = vld [vmem:[#allocation7] sm:$0xff]
    %v79 = vld [vmem:[#allocation7 + $0x8] sm:$0xff]
    %v80 = vld [vmem:[#allocation7 + $0x10] sm:$0xff]
    %v81 = vld [vmem:[#allocation7 + $0x18] sm:$0xff]
    %v82 = vld [vmem:[#allocation8] sm:$0xff]
    %v83 = vld [vmem:[#allocation8 + $0x8] sm:$0xff]
    %v84 = vld [vmem:[#allocation8 + $0x10] sm:$0xff]
    %v85 = vld [vmem:[#allocation8 + $0x18] sm:$0xff]
    %v86 = vld [vmem:[%s4] sm:$0x1]
    %v87 = vld [vmem:[%s5] sm:$0x1]
    %v89 = vlaneseq
    %v90 = vshrl.u32 %v89, 7
    %v91 = vsub.s32 0, %v90
    %v92 = vrot.slane %v86, %v91
    %vm94 = vcmask 261120
    %v96 = vsel %vm94, %v77, 0
    %98 = vmatprep.subr.mxu0 0.0
    %v99 = vand.u32 %v78, 4294901760
    %100 = vmatpush1.msra.mxu0 %v99
    %101 = vmatprep.subr.mxu0 0.0
    %v102 = vand.u32 %v79, 4294901760
    %103 = vmatpush1.msra.mxu0 %v102
    %104 = vmatprep.subr.mxu0 0.0
    %v105 = vand.u32 %v80, 4294901760
    %106 = vmatpush1.msra.mxu0 %v105
    %107 = vmatprep.subr.mxu0 0.0
    %v108 = vand.u32 %v81, 4294901760
    %109 = vmatpush1.msra.mxu0 %v108
    %110 = vmatprep.subr.mxu0 0.0
    %111 = vmatpush1.msra.mxu0 0.0
    %112 = vmatprep.subr.mxu0 0.0
    %113 = vmatpush1.msra.mxu0 0.0
    %114 = vmatprep.subr.mxu0 0.0
    %115 = vmatpush1.msra.mxu0 0.0
    %116 = vmatprep.subr.mxu0 0.0
    %117 = vmatpush1.msra.mxu0 0.0
    %118 = vmatprep.subr.mxu0 0.0
    %119 = vmatpush1.msra.mxu0 0.0
    %120 = vmatprep.subr.mxu0 0.0
    %121 = vmatpush1.msra.mxu0 0.0
    %122 = vmatprep.subr.mxu0 0.0
    %123 = vmatpush1.msra.mxu0 0.0
    %124 = vmatprep.subr.mxu0 0.0
    %125 = vmatpush1.msra.mxu0 0.0
    %126 = vmatprep.subr.mxu0 0.0
    %127 = vmatpush1.msra.mxu0 0.0
    %128 = vmatprep.subr.mxu0 0.0
    %129 = vmatpush1.msra.mxu0 0.0
    %130 = vmatprep.subr.mxu0 0.0
    %131 = vmatpush1.msra.mxu0 0.0
    %132 = vmatprep.subr.mxu0 0.0
    %133 = vmatpush1.msra.mxu0 0.0
    %134 = vmatprep.subr.mxu0 0.0
    %135 = vmatpush1.msra.mxu0 0.0
    %136 = vmatprep.subr.mxu0 0.0
    %137 = vmatpush1.msra.mxu0 0.0
    %138 = vmatprep.subr.mxu0 0.0
    %139 = vmatpush1.msra.mxu0 0.0
    %140 = vmatprep.subr.mxu0 0.0
    %141 = vmatpush1.msra.mxu0 0.0
    %142 = vmatprep.subr.mxu0 0.0
    %143 = vmatpush1.msra.mxu0 0.0
    %144 = vmatprep.subr.mxu0 0.0
    %145 = vmatpush1.msra.mxu0 0.0
    %146 = vmatprep.subr.mxu0 0.0
    %147 = vmatpush1.msra.mxu0 0.0
    %148 = vmatprep.subr.mxu0 0.0
    %149 = vmatpush1.msra.mxu0 0.0
    %150 = vmatprep.subr.mxu0 0.0
    %151 = vmatpush1.msra.mxu0 0.0
    %152 = vmatprep.subr.mxu0 0.0
    %153 = vmatpush1.msra.mxu0 0.0
    %154 = vmatprep.subr.mxu0 0.0
    %155 = vmatpush1.msra.mxu0 0.0
    %156 = vmatprep.subr.mxu0 0.0
    %157 = vmatpush1.msra.mxu0 0.0
    %158 = vmatprep.subr.mxu0 0.0
    %159 = vmatpush1.msra.mxu0 0.0
    %160 = vmatprep.subr.mxu0 0.0
    %161 = vmatpush1.msra.mxu0 0.0
    %162 = vmatprep.subr.mxu0 0.0
    %163 = vmatpush1.msra.mxu0 0.0
    %164 = vmatprep.subr.mxu0 0.0
    %165 = vmatpush1.msra.mxu0 0.0
    %166 = vmatprep.mubr.f32.mxu0 0.0
    %v167 = vand.u32 %v96, 4294901760
    %v168 = vsub.f32 %v96, %v167
    %v169 = vand.u32 %v168, 4294901760
    %v170 = vsub.f32 %v168, %v169
    %v171 = vand.u32 %v170, 4294901760
    %172 = vmatmul.mubr.f32.gmra.mrb[0].mxu0 %v171
    %v173 = vpop.f32.mrb[0].mxu0
    %v174 = vadd.f32 %v92, %v173
    %v175 = vpop.f32.mrb[0].mxu0
    %176 = vdwg.mxu0
    %177 = vmatprep.subr.mxu0 0.0
    %v178 = vand.u32 %v78, 4294901760
    %v179 = vsub.f32 %v78, %v178
    %v180 = vand.u32 %v179, 4294901760
    %v181 = vsub.f32 %v179, %v180
    %v182 = vand.u32 %v181, 4294901760
    %183 = vmatpush1.msra.mxu0 %v182
    %184 = vmatprep.subr.mxu0 0.0
    %v185 = vand.u32 %v79, 4294901760
    %v186 = vsub.f32 %v79, %v185
    %v187 = vand.u32 %v186, 4294901760
    %v188 = vsub.f32 %v186, %v187
    %v189 = vand.u32 %v188, 4294901760
    %190 = vmatpush1.msra.mxu0 %v189
    %191 = vmatprep.subr.mxu0 0.0
    %v192 = vand.u32 %v80, 4294901760
    %v193 = vsub.f32 %v80, %v192
    %v194 = vand.u32 %v193, 4294901760
    %v195 = vsub.f32 %v193, %v194
    %v196 = vand.u32 %v195, 4294901760
    %197 = vmatpush1.msra.mxu0 %v196
    %198 = vmatprep.subr.mxu0 0.0
    %v199 = vand.u32 %v81, 4294901760
    %v200 = vsub.f32 %v81, %v199
    %v201 = vand.u32 %v200, 4294901760
    %v202 = vsub.f32 %v200, %v201
    %v203 = vand.u32 %v202, 4294901760
    %204 = vmatpush1.msra.mxu0 %v203
    %205 = vmatprep.subr.mxu0 0.0
    %206 = vmatpush1.msra.mxu0 0.0
    %207 = vmatprep.subr.mxu0 0.0
    %208 = vmatpush1.msra.mxu0 0.0
    %209 = vmatprep.subr.mxu0 0.0
    %210 = vmatpush1.msra.mxu0 0.0
    %211 = vmatprep.subr.mxu0 0.0
    %212 = vmatpush1.msra.mxu0 0.0
    %213 = vmatprep.subr.mxu0 0.0
    %214 = vmatpush1.msra.mxu0 0.0
    %215 = vmatprep.subr.mxu0 0.0
    %216 = vmatpush1.msra.mxu0 0.0
    %217 = vmatprep.subr.mxu0 0.0
    %218 = vmatpush1.msra.mxu0 0.0
    %219 = vmatprep.subr.mxu0 0.0
    %220 = vmatpush1.msra.mxu0 0.0
    %221 = vmatprep.subr.mxu0 0.0
    %222 = vmatpush1.msra.mxu0 0.0
    %223 = vmatprep.subr.mxu0 0.0
    %224 = vmatpush1.msra.mxu0 0.0
    %225 = vmatprep.subr.mxu0 0.0
    %226 = vmatpush1.msra.mxu0 0.0
    %227 = vmatprep.subr.mxu0 0.0
    %228 = vmatpush1.msra.mxu0 0.0
    %229 = vmatprep.subr.mxu0 0.0
    %230 = vmatpush1.msra.mxu0 0.0
    %231 = vmatprep.subr.mxu0 0.0
    %232 = vmatpush1.msra.mxu0 0.0
    %233 = vmatprep.subr.mxu0 0.0
    %234 = vmatpush1.msra.mxu0 0.0
    %235 = vmatprep.subr.mxu0 0.0
    %236 = vmatpush1.msra.mxu0 0.0
    %237 = vmatprep.subr.mxu0 0.0
    %238 = vmatpush1.msra.mxu0 0.0
    %239 = vmatprep.subr.mxu0 0.0
    %240 = vmatpush1.msra.mxu0 0.0
    %241 = vmatprep.subr.mxu0 0.0
    %242 = vmatpush1.msra.mxu0 0.0
    %243 = vmatprep.subr.mxu0 0.0
    %244 = vmatpush1.msra.mxu0 0.0
    %245 = vmatprep.subr.mxu0 0.0
    %246 = vmatpush1.msra.mxu0 0.0
    %247 = vmatprep.subr.mxu0 0.0
    %248 = vmatpush1.msra.mxu0 0.0
    %249 = vmatprep.subr.mxu0 0.0
    %250 = vmatpush1.msra.mxu0 0.0
    %251 = vmatprep.subr.mxu0 0.0
    %252 = vmatpush1.msra.mxu0 0.0
    %253 = vmatprep.subr.mxu0 0.0
    %254 = vmatpush1.msra.mxu0 0.0
    %255 = vmatprep.subr.mxu0 0.0
    %256 = vmatpush1.msra.mxu0 0.0
    %257 = vmatprep.subr.mxu0 0.0
    %258 = vmatpush1.msra.mxu0 0.0
    %259 = vmatprep.subr.mxu0 0.0
    %260 = vmatpush1.msra.mxu0 0.0
    %261 = vmatprep.mubr.f32.mxu0 0.0
    %v262 = vand.u32 %v96, 4294901760
    %263 = vmatmul.mubr.f32.gmra.mrb[0].mxu0 %v262
    %v264 = vpop.f32.mrb[0].mxu0
    %v265 = vadd.f32 %v174, %v264
    %v266 = vpop.f32.mrb[0].mxu0
    %267 = vdwg.mxu0
    %268 = vmatprep.subr.mxu0 0.0
    %v269 = vand.u32 %v78, 4294901760
    %v270 = vsub.f32 %v78, %v269
    %271 = vmatpush1.msra.mxu0 %v270
    %272 = vmatprep.subr.mxu0 0.0
    %v273 = vand.u32 %v79, 4294901760
    %v274 = vsub.f32 %v79, %v273
    %275 = vmatpush1.msra.mxu0 %v274
    %276 = vmatprep.subr.mxu0 0.0
    %v277 = vand.u32 %v80, 4294901760
    %v278 = vsub.f32 %v80, %v277
    %279 = vmatpush1.msra.mxu0 %v278
    %280 = vmatprep.subr.mxu0 0.0
    %v281 = vand.u32 %v81, 4294901760
    %v282 = vsub.f32 %v81, %v281
    %283 = vmatpush1.msra.mxu0 %v282
    %284 = vmatprep.subr.mxu0 0.0
    %285 = vmatpush1.msra.mxu0 0.0
    %286 = vmatprep.subr.mxu0 0.0
    %287 = vmatpush1.msra.mxu0 0.0
    %288 = vmatprep.subr.mxu0 0.0
    %289 = vmatpush1.msra.mxu0 0.0
    %290 = vmatprep.subr.mxu0 0.0
    %291 = vmatpush1.msra.mxu0 0.0
    %292 = vmatprep.subr.mxu0 0.0
    %293 = vmatpush1.msra.mxu0 0.0
    %294 = vmatprep.subr.mxu0 0.0
    %295 = vmatpush1.msra.mxu0 0.0
    %296 = vmatprep.subr.mxu0 0.0
    %297 = vmatpush1.msra.mxu0 0.0
    %298 = vmatprep.subr.mxu0 0.0
    %299 = vmatpush1.msra.mxu0 0.0
    %300 = vmatprep.subr.mxu0 0.0
    %301 = vmatpush1.msra.mxu0 0.0
    %302 = vmatprep.subr.mxu0 0.0
    %303 = vmatpush1.msra.mxu0 0.0
    %304 = vmatprep.subr.mxu0 0.0
    %305 = vmatpush1.msra.mxu0 0.0
    %306 = vmatprep.subr.mxu0 0.0
    %307 = vmatpush1.msra.mxu0 0.0
    %308 = vmatprep.subr.mxu0 0.0
    %309 = vmatpush1.msra.mxu0 0.0
    %310 = vmatprep.subr.mxu0 0.0
    %311 = vmatpush1.msra.mxu0 0.0
    %312 = vmatprep.subr.mxu0 0.0
    %313 = vmatpush1.msra.mxu0 0.0
    %314 = vmatprep.subr.mxu0 0.0
    %315 = vmatpush1.msra.mxu0 0.0
    %316 = vmatprep.subr.mxu0 0.0
    %317 = vmatpush1.msra.mxu0 0.0
    %318 = vmatprep.subr.mxu0 0.0
    %319 = vmatpush1.msra.mxu0 0.0
    %320 = vmatprep.subr.mxu0 0.0
    %321 = vmatpush1.msra.mxu0 0.0
    %322 = vmatprep.subr.mxu0 0.0
    %323 = vmatpush1.msra.mxu0 0.0
    %324 = vmatprep.subr.mxu0 0.0
    %325 = vmatpush1.msra.mxu0 0.0
    %326 = vmatprep.subr.mxu0 0.0
    %327 = vmatpush1.msra.mxu0 0.0
    %328 = vmatprep.subr.mxu0 0.0
    %329 = vmatpush1.msra.mxu0 0.0
    %330 = vmatprep.subr.mxu0 0.0
    %331 = vmatpush1.msra.mxu0 0.0
    %332 = vmatprep.subr.mxu0 0.0
    %333 = vmatpush1.msra.mxu0 0.0
    %334 = vmatprep.subr.mxu0 0.0
    %335 = vmatpush1.msra.mxu0 0.0
    %336 = vmatprep.subr.mxu0 0.0
    %337 = vmatpush1.msra.mxu0 0.0
    %338 = vmatprep.subr.mxu0 0.0
    %339 = vmatpush1.msra.mxu0 0.0
    %340 = vmatprep.mubr.f32.mxu0 0.0
    %v341 = vand.u32 %v96, 4294901760
    %v342 = vsub.f32 %v96, %v341
    %343 = vmatmul.mubr.f32.gmra.mrb[0].mxu0 %v342
    %v344 = vpop.f32.mrb[0].mxu0
    %v345 = vadd.f32 %v265, %v344
    %v346 = vpop.f32.mrb[0].mxu0
    %347 = vdwg.mxu0
    %348 = vmatprep.subr.mxu0 0.0
    %v349 = vand.u32 %v78, 4294901760
    %350 = vmatpush1.msra.mxu0 %v349
    %351 = vmatprep.subr.mxu0 0.0
    %v352 = vand.u32 %v79, 4294901760
    %353 = vmatpush1.msra.mxu0 %v352
    %354 = vmatprep.subr.mxu0 0.0
    %v355 = vand.u32 %v80, 4294901760
    %356 = vmatpush1.msra.mxu0 %v355
    %357 = vmatprep.subr.mxu0 0.0
    %v358 = vand.u32 %v81, 4294901760
    %359 = vmatpush1.msra.mxu0 %v358
    %360 = vmatprep.subr.mxu0 0.0
    %361 = vmatpush1.msra.mxu0 0.0
    %362 = vmatprep.subr.mxu0 0.0
    %363 = vmatpush1.msra.mxu0 0.0
    %364 = vmatprep.subr.mxu0 0.0
    %365 = vmatpush1.msra.mxu0 0.0
    %366 = vmatprep.subr.mxu0 0.0
    %367 = vmatpush1.msra.mxu0 0.0
    %368 = vmatprep.subr.mxu0 0.0
    %369 = vmatpush1.msra.mxu0 0.0
    %370 = vmatprep.subr.mxu0 0.0
    %371 = vmatpush1.msra.mxu0 0.0
    %372 = vmatprep.subr.mxu0 0.0
    %373 = vmatpush1.msra.mxu0 0.0
    %374 = vmatprep.subr.mxu0 0.0
    %375 = vmatpush1.msra.mxu0 0.0
    %376 = vmatprep.subr.mxu0 0.0
    %377 = vmatpush1.msra.mxu0 0.0
    %378 = vmatprep.subr.mxu0 0.0
    %379 = vmatpush1.msra.mxu0 0.0
    %380 = vmatprep.subr.mxu0 0.0
    %381 = vmatpush1.msra.mxu0 0.0
    %382 = vmatprep.subr.mxu0 0.0
    %383 = vmatpush1.msra.mxu0 0.0
    %384 = vmatprep.subr.mxu0 0.0
    %385 = vmatpush1.msra.mxu0 0.0
    %386 = vmatprep.subr.mxu0 0.0
    %387 = vmatpush1.msra.mxu0 0.0
    %388 = vmatprep.subr.mxu0 0.0
    %389 = vmatpush1.msra.mxu0 0.0
    %390 = vmatprep.subr.mxu0 0.0
    %391 = vmatpush1.msra.mxu0 0.0
    %392 = vmatprep.subr.mxu0 0.0
    %393 = vmatpush1.msra.mxu0 0.0
    %394 = vmatprep.subr.mxu0 0.0
    %395 = vmatpush1.msra.mxu0 0.0
    %396 = vmatprep.subr.mxu0 0.0
    %397 = vmatpush1.msra.mxu0 0.0
    %398 = vmatprep.subr.mxu0 0.0
    %399 = vmatpush1.msra.mxu0 0.0
    %400 = vmatprep.subr.mxu0 0.0
    %401 = vmatpush1.msra.mxu0 0.0
    %402 = vmatprep.subr.mxu0 0.0
    %403 = vmatpush1.msra.mxu0 0.0
    %404 = vmatprep.subr.mxu0 0.0
    %405 = vmatpush1.msra.mxu0 0.0
    %406 = vmatprep.subr.mxu0 0.0
    %407 = vmatpush1.msra.mxu0 0.0
    %408 = vmatprep.subr.mxu0 0.0
    %409 = vmatpush1.msra.mxu0 0.0
    %410 = vmatprep.subr.mxu0 0.0
    %411 = vmatpush1.msra.mxu0 0.0
    %412 = vmatprep.subr.mxu0 0.0
    %413 = vmatpush1.msra.mxu0 0.0
    %414 = vmatprep.subr.mxu0 0.0
    %415 = vmatpush1.msra.mxu0 0.0
    %416 = vmatprep.mubr.f32.mxu0 0.0
    %v417 = vand.u32 %v96, 4294901760
    %v418 = vsub.f32 %v96, %v417
    %v419 = vand.u32 %v418, 4294901760
    %420 = vmatmul.mubr.f32.gmra.mrb[0].mxu0 %v419
    %v421 = vpop.f32.mrb[0].mxu0
    %v422 = vadd.f32 %v345, %v421
    %v423 = vpop.f32.mrb[0].mxu0
    %424 = vdwg.mxu0
    %425 = vmatprep.subr.mxu0 0.0
    %v426 = vand.u32 %v78, 4294901760
    %v427 = vsub.f32 %v78, %v426
    %v428 = vand.u32 %v427, 4294901760
    %429 = vmatpush1.msra.mxu0 %v428
    %430 = vmatprep.subr.mxu0 0.0
    %v431 = vand.u32 %v79, 4294901760
    %v432 = vsub.f32 %v79, %v431
    %v433 = vand.u32 %v432, 4294901760
    %434 = vmatpush1.msra.mxu0 %v433
    %435 = vmatprep.subr.mxu0 0.0
    %v436 = vand.u32 %v80, 4294901760
    %v437 = vsub.f32 %v80, %v436
    %v438 = vand.u32 %v437, 4294901760
    %439 = vmatpush1.msra.mxu0 %v438
    %440 = vmatprep.subr.mxu0 0.0
    %v441 = vand.u32 %v81, 4294901760
    %v442 = vsub.f32 %v81, %v441
    %v443 = vand.u32 %v442, 4294901760
    %444 = vmatpush1.msra.mxu0 %v443
    %445 = vmatprep.subr.mxu0 0.0
    %446 = vmatpush1.msra.mxu0 0.0
    %447 = vmatprep.subr.mxu0 0.0
    %448 = vmatpush1.msra.mxu0 0.0
    %449 = vmatprep.subr.mxu0 0.0
    %450 = vmatpush1.msra.mxu0 0.0
    %451 = vmatprep.subr.mxu0 0.0
    %452 = vmatpush1.msra.mxu0 0.0
    %453 = vmatprep.subr.mxu0 0.0
    %454 = vmatpush1.msra.mxu0 0.0
    %455 = vmatprep.subr.mxu0 0.0
    %456 = vmatpush1.msra.mxu0 0.0
    %457 = vmatprep.subr.mxu0 0.0
    %458 = vmatpush1.msra.mxu0 0.0
    %459 = vmatprep.subr.mxu0 0.0
    %460 = vmatpush1.msra.mxu0 0.0
    %461 = vmatprep.subr.mxu0 0.0
    %462 = vmatpush1.msra.mxu0 0.0
    %463 = vmatprep.subr.mxu0 0.0
    %464 = vmatpush1.msra.mxu0 0.0
    %465 = vmatprep.subr.mxu0 0.0
    %466 = vmatpush1.msra.mxu0 0.0
    %467 = vmatprep.subr.mxu0 0.0
    %468 = vmatpush1.msra.mxu0 0.0
    %469 = vmatprep.subr.mxu0 0.0
    %470 = vmatpush1.msra.mxu0 0.0
    %471 = vmatprep.subr.mxu0 0.0
    %472 = vmatpush1.msra.mxu0 0.0
    %473 = vmatprep.subr.mxu0 0.0
    %474 = vmatpush1.msra.mxu0 0.0
    %475 = vmatprep.subr.mxu0 0.0
    %476 = vmatpush1.msra.mxu0 0.0
    %477 = vmatprep.subr.mxu0 0.0
    %478 = vmatpush1.msra.mxu0 0.0
    %479 = vmatprep.subr.mxu0 0.0
    %480 = vmatpush1.msra.mxu0 0.0
    %481 = vmatprep.subr.mxu0 0.0
    %482 = vmatpush1.msra.mxu0 0.0
    %483 = vmatprep.subr.mxu0 0.0
    %484 = vmatpush1.msra.mxu0 0.0
    %485 = vmatprep.subr.mxu0 0.0
    %486 = vmatpush1.msra.mxu0 0.0
    %487 = vmatprep.subr.mxu0 0.0
    %488 = vmatpush1.msra.mxu0 0.0
    %489 = vmatprep.subr.mxu0 0.0
    %490 = vmatpush1.msra.mxu0 0.0
    %491 = vmatprep.subr.mxu0 0.0
    %492 = vmatpush1.msra.mxu0 0.0
    %493 = vmatprep.subr.mxu0 0.0
    %494 = vmatpush1.msra.mxu0 0.0
    %495 = vmatprep.subr.mxu0 0.0
    %496 = vmatpush1.msra.mxu0 0.0
    %497 = vmatprep.subr.mxu0 0.0
    %498 = vmatpush1.msra.mxu0 0.0
    %499 = vmatprep.subr.mxu0 0.0
    %500 = vmatpush1.msra.mxu0 0.0
    %501 = vmatprep.mubr.f32.mxu0 0.0
    %v502 = vand.u32 %v96, 4294901760
    %503 = vmatmul.mubr.f32.gmra.mrb[0].mxu0 %v502
    %v504 = vpop.f32.mrb[0].mxu0
    %v505 = vadd.f32 %v422, %v504
    %v506 = vpop.f32.mrb[0].mxu0
    %507 = vdwg.mxu0
    %508 = vmatprep.subr.mxu0 0.0
    %v509 = vand.u32 %v78, 4294901760
    %510 = vmatpush1.msra.mxu0 %v509
    %511 = vmatprep.subr.mxu0 0.0
    %v512 = vand.u32 %v79, 4294901760
    %513 = vmatpush1.msra.mxu0 %v512
    %514 = vmatprep.subr.mxu0 0.0
    %v515 = vand.u32 %v80, 4294901760
    %516 = vmatpush1.msra.mxu0 %v515
    %517 = vmatprep.subr.mxu0 0.0
    %v518 = vand.u32 %v81, 4294901760
    %519 = vmatpush1.msra.mxu0 %v518
    %520 = vmatprep.subr.mxu0 0.0
    %521 = vmatpush1.msra.mxu0 0.0
    %522 = vmatprep.subr.mxu0 0.0
    %523 = vmatpush1.msra.mxu0 0.0
    %524 = vmatprep.subr.mxu0 0.0
    %525 = vmatpush1.msra.mxu0 0.0
    %526 = vmatprep.subr.mxu0 0.0
    %527 = vmatpush1.msra.mxu0 0.0
    %528 = vmatprep.subr.mxu0 0.0
    %529 = vmatpush1.msra.mxu0 0.0
    %530 = vmatprep.subr.mxu0 0.0
    %531 = vmatpush1.msra.mxu0 0.0
    %532 = vmatprep.subr.mxu0 0.0
    %533 = vmatpush1.msra.mxu0 0.0
    %534 = vmatprep.subr.mxu0 0.0
    %535 = vmatpush1.msra.mxu0 0.0
    %536 = vmatprep.subr.mxu0 0.0
    %537 = vmatpush1.msra.mxu0 0.0
    %538 = vmatprep.subr.mxu0 0.0
    %539 = vmatpush1.msra.mxu0 0.0
    %540 = vmatprep.subr.mxu0 0.0
    %541 = vmatpush1.msra.mxu0 0.0
    %542 = vmatprep.subr.mxu0 0.0
    %543 = vmatpush1.msra.mxu0 0.0
    %544 = vmatprep.subr.mxu0 0.0
    %545 = vmatpush1.msra.mxu0 0.0
    %546 = vmatprep.subr.mxu0 0.0
    %547 = vmatpush1.msra.mxu0 0.0
    %548 = vmatprep.subr.mxu0 0.0
    %549 = vmatpush1.msra.mxu0 0.0
    %550 = vmatprep.subr.mxu0 0.0
    %551 = vmatpush1.msra.mxu0 0.0
    %552 = vmatprep.subr.mxu0 0.0
    %553 = vmatpush1.msra.mxu0 0.0
    %554 = vmatprep.subr.mxu0 0.0
    %555 = vmatpush1.msra.mxu0 0.0
    %556 = vmatprep.subr.mxu0 0.0
    %557 = vmatpush1.msra.mxu0 0.0
    %558 = vmatprep.subr.mxu0 0.0
    %559 = vmatpush1.msra.mxu0 0.0
    %560 = vmatprep.subr.mxu0 0.0
    %561 = vmatpush1.msra.mxu0 0.0
    %562 = vmatprep.subr.mxu0 0.0
    %563 = vmatpush1.msra.mxu0 0.0
    %564 = vmatprep.subr.mxu0 0.0
    %565 = vmatpush1.msra.mxu0 0.0
    %566 = vmatprep.subr.mxu0 0.0
    %567 = vmatpush1.msra.mxu0 0.0
    %568 = vmatprep.subr.mxu0 0.0
    %569 = vmatpush1.msra.mxu0 0.0
    %570 = vmatprep.subr.mxu0 0.0
    %571 = vmatpush1.msra.mxu0 0.0
    %572 = vmatprep.subr.mxu0 0.0
    %573 = vmatpush1.msra.mxu0 0.0
    %574 = vmatprep.subr.mxu0 0.0
    %575 = vmatpush1.msra.mxu0 0.0
    %576 = vmatprep.mubr.f32.mxu0 0.0
    %v577 = vand.u32 %v96, 4294901760
    %578 = vmatmul.mubr.f32.gmra.mrb[0].mxu0 %v577
    %v579 = vpop.f32.mrb[0].mxu0
    %v580 = vadd.f32 %v505, %v579
    %v581 = vpop.f32.mrb[0].mxu0
    %582 = vdwg.mxu0
    %v583 = vld [vmem:[#allocation5] sm:$0xff]
    %v584 = vld [vmem:[#allocation5 + $0x8] sm:$0xff]
    %v586 = vsel %vm94, %v583, 0
    %v589 = vsel %vm94, %v584, 0
    %591 = vmatprep.subr.mxu0 0.0
    %v592 = vand.u32 %v82, 4294901760
    %593 = vmatpush1.msra.mxu0 %v592
    %594 = vmatprep.subr.mxu0 0.0
    %v595 = vand.u32 %v83, 4294901760
    %596 = vmatpush1.msra.mxu0 %v595
    %597 = vmatprep.subr.mxu0 0.0
    %v598 = vand.u32 %v84, 4294901760
    %599 = vmatpush1.msra.mxu0 %v598
    %600 = vmatprep.subr.mxu0 0.0
    %v601 = vand.u32 %v85, 4294901760
    %602 = vmatpush1.msra.mxu0 %v601
    %603 = vmatprep.subr.mxu0 0.0
    %604 = vmatpush1.msra.mxu0 0.0
    %605 = vmatprep.subr.mxu0 0.0
    %606 = vmatpush1.msra.mxu0 0.0
    %607 = vmatprep.subr.mxu0 0.0
    %608 = vmatpush1.msra.mxu0 0.0
    %609 = vmatprep.subr.mxu0 0.0
    %610 = vmatpush1.msra.mxu0 0.0
    %611 = vmatprep.subr.mxu0 0.0
    %612 = vmatpush1.msra.mxu0 0.0
    %613 = vmatprep.subr.mxu0 0.0
    %614 = vmatpush1.msra.mxu0 0.0
    %615 = vmatprep.subr.mxu0 0.0
    %616 = vmatpush1.msra.mxu0 0.0
    %617 = vmatprep.subr.mxu0 0.0
    %618 = vmatpush1.msra.mxu0 0.0
    %619 = vmatprep.subr.mxu0 0.0
    %620 = vmatpush1.msra.mxu0 0.0
    %621 = vmatprep.subr.mxu0 0.0
    %622 = vmatpush1.msra.mxu0 0.0
    %623 = vmatprep.subr.mxu0 0.0
    %624 = vmatpush1.msra.mxu0 0.0
    %625 = vmatprep.subr.mxu0 0.0
    %626 = vmatpush1.msra.mxu0 0.0
    %627 = vmatprep.subr.mxu0 0.0
    %628 = vmatpush1.msra.mxu0 0.0
    %629 = vmatprep.subr.mxu0 0.0
    %630 = vmatpush1.msra.mxu0 0.0
    %631 = vmatprep.subr.mxu0 0.0
    %632 = vmatpush1.msra.mxu0 0.0
    %633 = vmatprep.subr.mxu0 0.0
    %634 = vmatpush1.msra.mxu0 0.0
    %635 = vmatprep.subr.mxu0 0.0
    %636 = vmatpush1.msra.mxu0 0.0
    %637 = vmatprep.subr.mxu0 0.0
    %638 = vmatpush1.msra.mxu0 0.0
    %639 = vmatprep.subr.mxu0 0.0
    %640 = vmatpush1.msra.mxu0 0.0
    %641 = vmatprep.subr.mxu0 0.0
    %642 = vmatpush1.msra.mxu0 0.0
    %643 = vmatprep.subr.mxu0 0.0
    %644 = vmatpush1.msra.mxu0 0.0
    %645 = vmatprep.subr.mxu0 0.0
    %646 = vmatpush1.msra.mxu0 0.0
    %647 = vmatprep.subr.mxu0 0.0
    %648 = vmatpush1.msra.mxu0 0.0
    %649 = vmatprep.subr.mxu0 0.0
    %650 = vmatpush1.msra.mxu0 0.0
    %651 = vmatprep.subr.mxu0 0.0
    %652 = vmatpush1.msra.mxu0 0.0
    %653 = vmatprep.subr.mxu0 0.0
    %654 = vmatpush1.msra.mxu0 0.0
    %655 = vmatprep.subr.mxu0 0.0
    %656 = vmatpush1.msra.mxu0 0.0
    %657 = vmatprep.subr.mxu0 0.0
    %658 = vmatpush1.msra.mxu0 0.0
    %659 = vmatprep.mubr.f32.mxu0 0.0
    %v660 = vand.u32 %v586, 4294901760
    %v661 = vsub.f32 %v586, %v660
    %v662 = vand.u32 %v661, 4294901760
    %v663 = vsub.f32 %v661, %v662
    %v664 = vand.u32 %v663, 4294901760
    %665 = vmatmul.mubr.f32.gmra.mrb[0].mxu0 %v664
    %v666 = vpop.f32.mrb[0].mxu0
    %v667 = vadd.f32 0.0, %v666
    %v668 = vpop.f32.mrb[0].mxu0
    %669 = vmatprep.mubr.f32.mxu0 0.0
    %v670 = vand.u32 %v589, 4294901760
    %v671 = vsub.f32 %v589, %v670
    %v672 = vand.u32 %v671, 4294901760
    %v673 = vsub.f32 %v671, %v672
    %v674 = vand.u32 %v673, 4294901760
    %675 = vmatmul.mubr.f32.gmra.mrb[0].mxu0 %v674
    %v676 = vpop.f32.mrb[0].mxu0
    %v677 = vadd.f32 0.0, %v676
    %v678 = vpop.f32.mrb[0].mxu0
    %679 = vdwg.mxu0
    %680 = vmatprep.subr.mxu0 0.0
    %v681 = vand.u32 %v82, 4294901760
    %v682 = vsub.f32 %v82, %v681
    %v683 = vand.u32 %v682, 4294901760
    %v684 = vsub.f32 %v682, %v683
    %v685 = vand.u32 %v684, 4294901760
    %686 = vmatpush1.msra.mxu0 %v685
    %687 = vmatprep.subr.mxu0 0.0
    %v688 = vand.u32 %v83, 4294901760
    %v689 = vsub.f32 %v83, %v688
    %v690 = vand.u32 %v689, 4294901760
    %v691 = vsub.f32 %v689, %v690
    %v692 = vand.u32 %v691, 4294901760
    %693 = vmatpush1.msra.mxu0 %v692
    %694 = vmatprep.subr.mxu0 0.0
    %v695 = vand.u32 %v84, 4294901760
    %v696 = vsub.f32 %v84, %v695
    %v697 = vand.u32 %v696, 4294901760
    %v698 = vsub.f32 %v696, %v697
    %v699 = vand.u32 %v698, 4294901760
    %700 = vmatpush1.msra.mxu0 %v699
    %701 = vmatprep.subr.mxu0 0.0
    %v702 = vand.u32 %v85, 4294901760
    %v703 = vsub.f32 %v85, %v702
    %v704 = vand.u32 %v703, 4294901760
    %v705 = vsub.f32 %v703, %v704
    %v706 = vand.u32 %v705, 4294901760
    %707 = vmatpush1.msra.mxu0 %v706
    %708 = vmatprep.subr.mxu0 0.0
    %709 = vmatpush1.msra.mxu0 0.0
    %710 = vmatprep.subr.mxu0 0.0
    %711 = vmatpush1.msra.mxu0 0.0
    %712 = vmatprep.subr.mxu0 0.0
    %713 = vmatpush1.msra.mxu0 0.0
    %714 = vmatprep.subr.mxu0 0.0
    %715 = vmatpush1.msra.mxu0 0.0
    %716 = vmatprep.subr.mxu0 0.0
    %717 = vmatpush1.msra.mxu0 0.0
    %718 = vmatprep.subr.mxu0 0.0
    %719 = vmatpush1.msra.mxu0 0.0
    %720 = vmatprep.subr.mxu0 0.0
    %721 = vmatpush1.msra.mxu0 0.0
    %722 = vmatprep.subr.mxu0 0.0
    %723 = vmatpush1.msra.mxu0 0.0
    %724 = vmatprep.subr.mxu0 0.0
    %725 = vmatpush1.msra.mxu0 0.0
    %726 = vmatprep.subr.mxu0 0.0
    %727 = vmatpush1.msra.mxu0 0.0
    %728 = vmatprep.subr.mxu0 0.0
    %729 = vmatpush1.msra.mxu0 0.0
    %730 = vmatprep.subr.mxu0 0.0
    %731 = vmatpush1.msra.mxu0 0.0
    %732 = vmatprep.subr.mxu0 0.0
    %733 = vmatpush1.msra.mxu0 0.0
    %734 = vmatprep.subr.mxu0 0.0
    %735 = vmatpush1.msra.mxu0 0.0
    %736 = vmatprep.subr.mxu0 0.0
    %737 = vmatpush1.msra.mxu0 0.0
    %738 = vmatprep.subr.mxu0 0.0
    %739 = vmatpush1.msra.mxu0 0.0
    %740 = vmatprep.subr.mxu0 0.0
    %741 = vmatpush1.msra.mxu0 0.0
    %742 = vmatprep.subr.mxu0 0.0
    %743 = vmatpush1.msra.mxu0 0.0
    %744 = vmatprep.subr.mxu0 0.0
    %745 = vmatpush1.msra.mxu0 0.0
    %746 = vmatprep.subr.mxu0 0.0
    %747 = vmatpush1.msra.mxu0 0.0
    %748 = vmatprep.subr.mxu0 0.0
    %749 = vmatpush1.msra.mxu0 0.0
    %750 = vmatprep.subr.mxu0 0.0
    %751 = vmatpush1.msra.mxu0 0.0
    %752 = vmatprep.subr.mxu0 0.0
    %753 = vmatpush1.msra.mxu0 0.0
    %754 = vmatprep.subr.mxu0 0.0
    %755 = vmatpush1.msra.mxu0 0.0
    %756 = vmatprep.subr.mxu0 0.0
    %757 = vmatpush1.msra.mxu0 0.0
    %758 = vmatprep.subr.mxu0 0.0
    %759 = vmatpush1.msra.mxu0 0.0
    %760 = vmatprep.subr.mxu0 0.0
    %761 = vmatpush1.msra.mxu0 0.0
    %762 = vmatprep.subr.mxu0 0.0
    %763 = vmatpush1.msra.mxu0 0.0
    %764 = vmatprep.mubr.f32.mxu0 0.0
    %v765 = vand.u32 %v586, 4294901760
    %766 = vmatmul.mubr.f32.gmra.mrb[0].mxu0 %v765
    %v767 = vpop.f32.mrb[0].mxu0
    %v768 = vadd.f32 %v667, %v767
    %v769 = vpop.f32.mrb[0].mxu0
    %770 = vmatprep.mubr.f32.mxu0 0.0
    %v771 = vand.u32 %v589, 4294901760
    %772 = vmatmul.mubr.f32.gmra.mrb[0].mxu0 %v771
    %v773 = vpop.f32.mrb[0].mxu0
    %v774 = vadd.f32 %v677, %v773
    %v775 = vpop.f32.mrb[0].mxu0
    %776 = vdwg.mxu0
    %777 = vmatprep.subr.mxu0 0.0
    %v778 = vand.u32 %v82, 4294901760
    %v779 = vsub.f32 %v82, %v778
    %780 = vmatpush1.msra.mxu0 %v779
    %781 = vmatprep.subr.mxu0 0.0
    %v782 = vand.u32 %v83, 4294901760
    %v783 = vsub.f32 %v83, %v782
    %784 = vmatpush1.msra.mxu0 %v783
    %785 = vmatprep.subr.mxu0 0.0
    %v786 = vand.u32 %v84, 4294901760
    %v787 = vsub.f32 %v84, %v786
    %788 = vmatpush1.msra.mxu0 %v787
    %789 = vmatprep.subr.mxu0 0.0
    %v790 = vand.u32 %v85, 4294901760
    %v791 = vsub.f32 %v85, %v790
    %792 = vmatpush1.msra.mxu0 %v791
    %793 = vmatprep.subr.mxu0 0.0
    %794 = vmatpush1.msra.mxu0 0.0
    %795 = vmatprep.subr.mxu0 0.0
    %796 = vmatpush1.msra.mxu0 0.0
    %797 = vmatprep.subr.mxu0 0.0
    %798 = vmatpush1.msra.mxu0 0.0
    %799 = vmatprep.subr.mxu0 0.0
    %800 = vmatpush1.msra.mxu0 0.0
    %801 = vmatprep.subr.mxu0 0.0
    %802 = vmatpush1.msra.mxu0 0.0
    %803 = vmatprep.subr.mxu0 0.0
    %804 = vmatpush1.msra.mxu0 0.0
    %805 = vmatprep.subr.mxu0 0.0
    %806 = vmatpush1.msra.mxu0 0.0
    %807 = vmatprep.subr.mxu0 0.0
    %808 = vmatpush1.msra.mxu0 0.0
    %809 = vmatprep.subr.mxu0 0.0
    %810 = vmatpush1.msra.mxu0 0.0
    %811 = vmatprep.subr.mxu0 0.0
    %812 = vmatpush1.msra.mxu0 0.0
    %813 = vmatprep.subr.mxu0 0.0
    %814 = vmatpush1.msra.mxu0 0.0
    %815 = vmatprep.subr.mxu0 0.0
    %816 = vmatpush1.msra.mxu0 0.0
    %817 = vmatprep.subr.mxu0 0.0
    %818 = vmatpush1.msra.mxu0 0.0
    %819 = vmatprep.subr.mxu0 0.0
    %820 = vmatpush1.msra.mxu0 0.0
    %821 = vmatprep.subr.mxu0 0.0
    %822 = vmatpush1.msra.mxu0 0.0
    %823 = vmatprep.subr.mxu0 0.0
    %824 = vmatpush1.msra.mxu0 0.0
    %825 = vmatprep.subr.mxu0 0.0
    %826 = vmatpush1.msra.mxu0 0.0
    %827 = vmatprep.subr.mxu0 0.0
    %828 = vmatpush1.msra.mxu0 0.0
    %829 = vmatprep.subr.mxu0 0.0
    %830 = vmatpush1.msra.mxu0 0.0
    %831 = vmatprep.subr.mxu0 0.0
    %832 = vmatpush1.msra.mxu0 0.0
    %833 = vmatprep.subr.mxu0 0.0
    %834 = vmatpush1.msra.mxu0 0.0
    %835 = vmatprep.subr.mxu0 0.0
    %836 = vmatpush1.msra.mxu0 0.0
    %837 = vmatprep.subr.mxu0 0.0
    %838 = vmatpush1.msra.mxu0 0.0
    %839 = vmatprep.subr.mxu0 0.0
    %840 = vmatpush1.msra.mxu0 0.0
    %841 = vmatprep.subr.mxu0 0.0
    %842 = vmatpush1.msra.mxu0 0.0
    %843 = vmatprep.subr.mxu0 0.0
    %844 = vmatpush1.msra.mxu0 0.0
    %845 = vmatprep.subr.mxu0 0.0
    %846 = vmatpush1.msra.mxu0 0.0
    %847 = vmatprep.subr.mxu0 0.0
    %848 = vmatpush1.msra.mxu0 0.0
    %849 = vmatprep.mubr.f32.mxu0 0.0
    %v850 = vand.u32 %v586, 4294901760
    %v851 = vsub.f32 %v586, %v850
    %852 = vmatmul.mubr.f32.gmra.mrb[0].mxu0 %v851
    %v853 = vpop.f32.mrb[0].mxu0
    %v854 = vadd.f32 %v768, %v853
    %v855 = vpop.f32.mrb[0].mxu0
    %856 = vmatprep.mubr.f32.mxu0 0.0
    %v857 = vand.u32 %v589, 4294901760
    %v858 = vsub.f32 %v589, %v857
    %859 = vmatmul.mubr.f32.gmra.mrb[0].mxu0 %v858
    %v860 = vpop.f32.mrb[0].mxu0
    %v861 = vadd.f32 %v774, %v860
    %v862 = vpop.f32.mrb[0].mxu0
    %863 = vdwg.mxu0
    %864 = vmatprep.subr.mxu0 0.0
    %v865 = vand.u32 %v82, 4294901760
    %866 = vmatpush1.msra.mxu0 %v865
    %867 = vmatprep.subr.mxu0 0.0
    %v868 = vand.u32 %v83, 4294901760
    %869 = vmatpush1.msra.mxu0 %v868
    %870 = vmatprep.subr.mxu0 0.0
    %v871 = vand.u32 %v84, 4294901760
    %872 = vmatpush1.msra.mxu0 %v871
    %873 = vmatprep.subr.mxu0 0.0
    %v874 = vand.u32 %v85, 4294901760
    %875 = vmatpush1.msra.mxu0 %v874
    %876 = vmatprep.subr.mxu0 0.0
    %877 = vmatpush1.msra.mxu0 0.0
    %878 = vmatprep.subr.mxu0 0.0
    %879 = vmatpush1.msra.mxu0 0.0
    %880 = vmatprep.subr.mxu0 0.0
    %881 = vmatpush1.msra.mxu0 0.0
    %882 = vmatprep.subr.mxu0 0.0
    %883 = vmatpush1.msra.mxu0 0.0
    %884 = vmatprep.subr.mxu0 0.0
    %885 = vmatpush1.msra.mxu0 0.0
    %886 = vmatprep.subr.mxu0 0.0
    %887 = vmatpush1.msra.mxu0 0.0
    %888 = vmatprep.subr.mxu0 0.0
    %889 = vmatpush1.msra.mxu0 0.0
    %890 = vmatprep.subr.mxu0 0.0
    %891 = vmatpush1.msra.mxu0 0.0
    %892 = vmatprep.subr.mxu0 0.0
    %893 = vmatpush1.msra.mxu0 0.0
    %894 = vmatprep.subr.mxu0 0.0
    %895 = vmatpush1.msra.mxu0 0.0
    %896 = vmatprep.subr.mxu0 0.0
    %897 = vmatpush1.msra.mxu0 0.0
    %898 = vmatprep.subr.mxu0 0.0
    %899 = vmatpush1.msra.mxu0 0.0
    %900 = vmatprep.subr.mxu0 0.0
    %901 = vmatpush1.msra.mxu0 0.0
    %902 = vmatprep.subr.mxu0 0.0
    %903 = vmatpush1.msra.mxu0 0.0
    %904 = vmatprep.subr.mxu0 0.0
    %905 = vmatpush1.msra.mxu0 0.0
    %906 = vmatprep.subr.mxu0 0.0
    %907 = vmatpush1.msra.mxu0 0.0
    %908 = vmatprep.subr.mxu0 0.0
    %909 = vmatpush1.msra.mxu0 0.0
    %910 = vmatprep.subr.mxu0 0.0
    %911 = vmatpush1.msra.mxu0 0.0
    %912 = vmatprep.subr.mxu0 0.0
    %913 = vmatpush1.msra.mxu0 0.0
    %914 = vmatprep.subr.mxu0 0.0
    %915 = vmatpush1.msra.mxu0 0.0
    %916 = vmatprep.subr.mxu0 0.0
    %917 = vmatpush1.msra.mxu0 0.0
    %918 = vmatprep.subr.mxu0 0.0
    %919 = vmatpush1.msra.mxu0 0.0
    %920 = vmatprep.subr.mxu0 0.0
    %921 = vmatpush1.msra.mxu0 0.0
    %922 = vmatprep.subr.mxu0 0.0
    %923 = vmatpush1.msra.mxu0 0.0
    %924 = vmatprep.subr.mxu0 0.0
    %925 = vmatpush1.msra.mxu0 0.0
    %926 = vmatprep.subr.mxu0 0.0
    %927 = vmatpush1.msra.mxu0 0.0
    %928 = vmatprep.subr.mxu0 0.0
    %929 = vmatpush1.msra.mxu0 0.0
    %930 = vmatprep.subr.mxu0 0.0
    %931 = vmatpush1.msra.mxu0 0.0
    %932 = vmatprep.mubr.f32.mxu0 0.0
    %v933 = vand.u32 %v586, 4294901760
    %v934 = vsub.f32 %v586, %v933
    %v935 = vand.u32 %v934, 4294901760
    %936 = vmatmul.mubr.f32.gmra.mrb[0].mxu0 %v935
    %v937 = vpop.f32.mrb[0].mxu0
    %v938 = vadd.f32 %v854, %v937
    %v939 = vpop.f32.mrb[0].mxu0
    %940 = vmatprep.mubr.f32.mxu0 0.0
    %v941 = vand.u32 %v589, 4294901760
    %v942 = vsub.f32 %v589, %v941
    %v943 = vand.u32 %v942, 4294901760
    %944 = vmatmul.mubr.f32.gmra.mrb[0].mxu0 %v943
    %v945 = vpop.f32.mrb[0].mxu0
    %v946 = vadd.f32 %v861, %v945
    %v947 = vpop.f32.mrb[0].mxu0
    %948 = vdwg.mxu0
    %949 = vmatprep.subr.mxu0 0.0
    %v950 = vand.u32 %v82, 4294901760
    %v951 = vsub.f32 %v82, %v950
    %v952 = vand.u32 %v951, 4294901760
    %953 = vmatpush1.msra.mxu0 %v952
    %954 = vmatprep.subr.mxu0 0.0
    %v955 = vand.u32 %v83, 4294901760
    %v956 = vsub.f32 %v83, %v955
    %v957 = vand.u32 %v956, 4294901760
    %958 = vmatpush1.msra.mxu0 %v957
    %959 = vmatprep.subr.mxu0 0.0
    %v960 = vand.u32 %v84, 4294901760
    %v961 = vsub.f32 %v84, %v960
    %v962 = vand.u32 %v961, 4294901760
    %963 = vmatpush1.msra.mxu0 %v962
    %964 = vmatprep.subr.mxu0 0.0
    %v965 = vand.u32 %v85, 4294901760
    %v966 = vsub.f32 %v85, %v965
    %v967 = vand.u32 %v966, 4294901760
    %968 = vmatpush1.msra.mxu0 %v967
    %969 = vmatprep.subr.mxu0 0.0
    %970 = vmatpush1.msra.mxu0 0.0
    %971 = vmatprep.subr.mxu0 0.0
    %972 = vmatpush1.msra.mxu0 0.0
    %973 = vmatprep.subr.mxu0 0.0
    %974 = vmatpush1.msra.mxu0 0.0
    %975 = vmatprep.subr.mxu0 0.0
    %976 = vmatpush1.msra.mxu0 0.0
    %977 = vmatprep.subr.mxu0 0.0
    %978 = vmatpush1.msra.mxu0 0.0
    %979 = vmatprep.subr.mxu0 0.0
    %980 = vmatpush1.msra.mxu0 0.0
    %981 = vmatprep.subr.mxu0 0.0
    %982 = vmatpush1.msra.mxu0 0.0
    %983 = vmatprep.subr.mxu0 0.0
    %984 = vmatpush1.msra.mxu0 0.0
    %985 = vmatprep.subr.mxu0 0.0
    %986 = vmatpush1.msra.mxu0 0.0
    %987 = vmatprep.subr.mxu0 0.0
    %988 = vmatpush1.msra.mxu0 0.0
    %989 = vmatprep.subr.mxu0 0.0
    %990 = vmatpush1.msra.mxu0 0.0
    %991 = vmatprep.subr.mxu0 0.0
    %992 = vmatpush1.msra.mxu0 0.0
    %993 = vmatprep.subr.mxu0 0.0
    %994 = vmatpush1.msra.mxu0 0.0
    %995 = vmatprep.subr.mxu0 0.0
    %996 = vmatpush1.msra.mxu0 0.0
    %997 = vmatprep.subr.mxu0 0.0
    %998 = vmatpush1.msra.mxu0 0.0
    %999 = vmatprep.subr.mxu0 0.0
    %1000 = vmatpush1.msra.mxu0 0.0
    %1001 = vmatprep.subr.mxu0 0.0
    %1002 = vmatpush1.msra.mxu0 0.0
    %1003 = vmatprep.subr.mxu0 0.0
    %1004 = vmatpush1.msra.mxu0 0.0
    %1005 = vmatprep.subr.mxu0 0.0
    %1006 = vmatpush1.msra.mxu0 0.0
    %1007 = vmatprep.subr.mxu0 0.0
    %1008 = vmatpush1.msra.mxu0 0.0
    %1009 = vmatprep.subr.mxu0 0.0
    %1010 = vmatpush1.msra.mxu0 0.0
    %1011 = vmatprep.subr.mxu0 0.0
    %1012 = vmatpush1.msra.mxu0 0.0
    %1013 = vmatprep.subr.mxu0 0.0
    %1014 = vmatpush1.msra.mxu0 0.0
    %1015 = vmatprep.subr.mxu0 0.0
    %1016 = vmatpush1.msra.mxu0 0.0
    %1017 = vmatprep.subr.mxu0 0.0
    %1018 = vmatpush1.msra.mxu0 0.0
    %1019 = vmatprep.subr.mxu0 0.0
    %1020 = vmatpush1.msra.mxu0 0.0
    %1021 = vmatprep.subr.mxu0 0.0
    %1022 = vmatpush1.msra.mxu0 0.0
    %1023 = vmatprep.subr.mxu0 0.0
    %1024 = vmatpush1.msra.mxu0 0.0
    %1025 = vmatprep.mubr.f32.mxu0 0.0
    %v1026 = vand.u32 %v586, 4294901760
    %1027 = vmatmul.mubr.f32.gmra.mrb[0].mxu0 %v1026
    %v1028 = vpop.f32.mrb[0].mxu0
    %v1029 = vadd.f32 %v938, %v1028
    %v1030 = vpop.f32.mrb[0].mxu0
    %1031 = vmatprep.mubr.f32.mxu0 0.0
    %v1032 = vand.u32 %v589, 4294901760
    %1033 = vmatmul.mubr.f32.gmra.mrb[0].mxu0 %v1032
    %v1034 = vpop.f32.mrb[0].mxu0
    %v1035 = vadd.f32 %v946, %v1034
    %v1036 = vpop.f32.mrb[0].mxu0
    %1037 = vdwg.mxu0
    %1038 = vmatprep.subr.mxu0 0.0
    %v1039 = vand.u32 %v82, 4294901760
    %1040 = vmatpush1.msra.mxu0 %v1039
    %1041 = vmatprep.subr.mxu0 0.0
    %v1042 = vand.u32 %v83, 4294901760
    %1043 = vmatpush1.msra.mxu0 %v1042
    %1044 = vmatprep.subr.mxu0 0.0
    %v1045 = vand.u32 %v84, 4294901760
    %1046 = vmatpush1.msra.mxu0 %v1045
    %1047 = vmatprep.subr.mxu0 0.0
    %v1048 = vand.u32 %v85, 4294901760
    %1049 = vmatpush1.msra.mxu0 %v1048
    %1050 = vmatprep.subr.mxu0 0.0
    %1051 = vmatpush1.msra.mxu0 0.0
    %1052 = vmatprep.subr.mxu0 0.0
    %1053 = vmatpush1.msra.mxu0 0.0
    %1054 = vmatprep.subr.mxu0 0.0
    %1055 = vmatpush1.msra.mxu0 0.0
    %1056 = vmatprep.subr.mxu0 0.0
    %1057 = vmatpush1.msra.mxu0 0.0
    %1058 = vmatprep.subr.mxu0 0.0
    %1059 = vmatpush1.msra.mxu0 0.0
    %1060 = vmatprep.subr.mxu0 0.0
    %1061 = vmatpush1.msra.mxu0 0.0
    %1062 = vmatprep.subr.mxu0 0.0
    %1063 = vmatpush1.msra.mxu0 0.0
    %1064 = vmatprep.subr.mxu0 0.0
    %1065 = vmatpush1.msra.mxu0 0.0
    %1066 = vmatprep.subr.mxu0 0.0
    %1067 = vmatpush1.msra.mxu0 0.0
    %1068 = vmatprep.subr.mxu0 0.0
    %1069 = vmatpush1.msra.mxu0 0.0
    %1070 = vmatprep.subr.mxu0 0.0
    %1071 = vmatpush1.msra.mxu0 0.0
    %1072 = vmatprep.subr.mxu0 0.0
    %1073 = vmatpush1.msra.mxu0 0.0
    %1074 = vmatprep.subr.mxu0 0.0
    %1075 = vmatpush1.msra.mxu0 0.0
    %1076 = vmatprep.subr.mxu0 0.0
    %1077 = vmatpush1.msra.mxu0 0.0
    %1078 = vmatprep.subr.mxu0 0.0
    %1079 = vmatpush1.msra.mxu0 0.0
    %1080 = vmatprep.subr.mxu0 0.0
    %1081 = vmatpush1.msra.mxu0 0.0
    %1082 = vmatprep.subr.mxu0 0.0
    %1083 = vmatpush1.msra.mxu0 0.0
    %1084 = vmatprep.subr.mxu0 0.0
    %1085 = vmatpush1.msra.mxu0 0.0
    %1086 = vmatprep.subr.mxu0 0.0
    %1087 = vmatpush1.msra.mxu0 0.0
    %1088 = vmatprep.subr.mxu0 0.0
    %1089 = vmatpush1.msra.mxu0 0.0
    %1090 = vmatprep.subr.mxu0 0.0
    %1091 = vmatpush1.msra.mxu0 0.0
    %1092 = vmatprep.subr.mxu0 0.0
    %1093 = vmatpush1.msra.mxu0 0.0
    %1094 = vmatprep.subr.mxu0 0.0
    %1095 = vmatpush1.msra.mxu0 0.0
    %1096 = vmatprep.subr.mxu0 0.0
    %1097 = vmatpush1.msra.mxu0 0.0
    %1098 = vmatprep.subr.mxu0 0.0
    %1099 = vmatpush1.msra.mxu0 0.0
    %1100 = vmatprep.subr.mxu0 0.0
    %1101 = vmatpush1.msra.mxu0 0.0
    %1102 = vmatprep.subr.mxu0 0.0
    %1103 = vmatpush1.msra.mxu0 0.0
    %1104 = vmatprep.subr.mxu0 0.0
    %1105 = vmatpush1.msra.mxu0 0.0
    %1106 = vmatprep.mubr.f32.mxu0 0.0
    %v1107 = vand.u32 %v586, 4294901760
    %1108 = vmatmul.mubr.f32.gmra.mrb[0].mxu0 %v1107
    %v1109 = vpop.f32.mrb[0].mxu0
    %v1110 = vadd.f32 %v1029, %v1109
    %v1111 = vpop.f32.mrb[0].mxu0
    %1112 = vmatprep.mubr.f32.mxu0 0.0
    %v1113 = vand.u32 %v589, 4294901760
    %1114 = vmatmul.mubr.f32.gmra.mrb[0].mxu0 %v1113
    %v1115 = vpop.f32.mrb[0].mxu0
    %v1116 = vadd.f32 %v1035, %v1115
    %v1117 = vpop.f32.mrb[0].mxu0
    %1118 = vdwg.mxu0
    %v1121 = vunpack.c.l.s4 1966171168
    %v1122 = vunpack.c.0.s8 %v1121
    %v1123 = vlaneseq
    %v1124 = vshrl.u32 %v1123, 7
    %v1125 = vsub.s32 %v1122, %v1124
    %v1126 = vrot.slane %v580, %v1125
    %v1127 = vcombine.high %v1126, %v1126
    %v1129 = vunpack.c.l.s4 1966171168
    %v1130 = vunpack.c.0.s8 %v1129
    %v1131 = vlaneseq
    %v1132 = vshrl.u32 %v1131, 7
    %v1133 = vsub.s32 %v1130, %v1132
    %v1134 = vrot.slane %v1126, %v1133
    %v1136 = vunpack.c.l.s4 1966171168
    %v1137 = vunpack.c.0.s8 %v1136
    %v1138 = vlaneseq
    %v1139 = vshrl.u32 %v1138, 7
    %v1140 = vsub.s32 %v1137, %v1139
    %v1141 = vrot.slane %v1127, %v1140
    %v1142 = vlaneseq
    %v1143 = vshrl.u32 %v1142, 7
    %v1144 = vsub.s32 0, %v1143
    %v1145 = vrot.slane %v1134, %v1144
    %v1146 = vlaneseq
    %v1147 = vshrl.u32 %v1146, 7
    %v1148 = vsub.s32 0, %v1147
    %v1149 = vrot.slane %v1141, %v1148
    %v1152 = vadd.f32 %v1110, %v1145
    %v1153 = vadd.f32 %v1116, %v1149
    %v1154 = vtanh.pop %v1152
    %v1155 = vtanh.pop %v1153
    %v1157 = vlaneseq
    %v1158 = vshrl.u32 %v1157, 7
    %v1159 = vsub.s32 0, %v1158
    %v1160 = vrot.slane %v87, %v1159
    %v1162 = vmul.f32 %v1154, %v1160
    %v1163 = vmul.f32 %v1155, %v1160
    %v1164 = vsel %vm94, %v1162, 0.0
    %1165 = vadd.xlane.f32.xlu0 %v1164
    %v1166 = vpop.xlane.xlu0 %1165
    %v1167 = vsel %vm94, %v1163, 0.0
    %1168 = vadd.xlane.f32.xlu0 %v1167
    %v1169 = vpop.xlane.xlu0 %1168
    %v1172 = vlaneseq
    %v1173 = vand.u32 %v1172, 127
    %v1174 = vlaneseq
    %v1175 = vshrl.u32 %v1174, 7
    %v1176 = vsub.s32 %v1173, %v1175
    %v1177 = vrot.slane %v1166, %v1176
    %v1178 = vlaneseq
    %v1179 = vshrl.u32 %v1178, 7
    %v1180 = vsub.s32 %v1173, %v1179
    %v1181 = vrot.slane %v1169, %v1180
    %vm1182 = vcmask 1041409
    %v1183 = vsel %vm1182, %v1181, %v1177
    %vm1185 = vcmask 58368
    %v1186 = vsel %vm1185, %v1183, -inf
    %1187 = vmax.xlane.f32.xlu0 %v1186
    %v1188 = vpop.xlane.xlu0 %1187
    %v1190 = vlaneseq
    %v1191 = vshrl.u32 %v1190, 7
    %v1192 = vsub.s32 0, %v1191
    %v1193 = vrot.slane %v1188, %v1192
    %v1194 = vlaneseq
    %v1195 = vshrl.u32 %v1194, 7
    %v1196 = vsub.s32 1, %v1195
    %v1197 = vrot.slane %v1188, %v1196
    %v1200 = vsub.f32 %v1166, %v1193
    %v1201 = vsub.f32 %v1169, %v1197
    %v1202 = vmul.f32 %v1200, 1.442695
    %v1203 = vpow.pop %v1202
    %v1204 = vmul.f32 %v1201, 1.442695
    %v1205 = vpow.pop %v1204
    %1208 = vset.pattern.permute.xlu0 0
    %1209 = vperm.xlu0 %1208, %v1203
    %v1210 = vpop.permute.xlu0 %1209
    %1211 = vset.pattern.permute.xlu0 0
    %1212 = vperm.xlu0 %1211, %v1205
    %v1213 = vpop.permute.xlu0 %1212
    %v1214 = vlaneseq
    %v1215 = vshrl.u32 %v1214, 7
    %v1216 = vsub.s32 %v1173, %v1215
    %v1217 = vrot.slane %v1210, %v1216
    %v1218 = vlaneseq
    %v1219 = vshrl.u32 %v1218, 7
    %v1220 = vsub.s32 %v1173, %v1219
    %v1221 = vrot.slane %v1213, %v1220
    %v1222 = vsel %vm1182, %v1221, %v1217
    %v1224 = vsel %vm1185, %v1222, 0.0
    %1225 = vadd.xlane.f32.xlu0 %v1224
    %v1226 = vpop.xlane.xlu0 %1225
    %v1228 = vlaneseq
    %v1229 = vshrl.u32 %v1228, 7
    %v1230 = vsub.s32 0, %v1229
    %v1231 = vrot.slane %v1226, %v1230
    %v1232 = vlaneseq
    %v1233 = vshrl.u32 %v1232, 7
    %v1234 = vsub.s32 1, %v1233
    %v1235 = vrot.slane %v1226, %v1234
    %v1238 = vrcp.pop %v1231
    %v1239 = vmul.f32 %v1203, %v1238
    %v1240 = vrcp.pop %v1235
    %v1241 = vmul.f32 %v1205, %v1240
    %1244 = vset.pattern.permute.xlu0 0
    %1245 = vperm.xlu0 %1244, %v1239
    %v1246 = vpop.permute.xlu0 %1245
    %1247 = vset.pattern.permute.xlu0 0
    %1248 = vperm.xlu0 %1247, %v1241
    %v1249 = vpop.permute.xlu0 %1248
    %v1250 = vlaneseq
    %v1251 = vshrl.u32 %v1250, 7
    %v1252 = vsub.s32 %v1173, %v1251
    %v1253 = vrot.slane %v1246, %v1252
    %v1254 = vlaneseq
    %v1255 = vshrl.u32 %v1254, 7
    %v1256 = vsub.s32 %v1173, %v1255
    %v1257 = vrot.slane %v1249, %v1256
    %v1258 = vsel %vm1182, %v1257, %v1253
    %1260 = vst.msk [vmem:[#allocation10] sm:$0x3] %vm1185, %v1258
    // Predicated region
    $region42: #{tpu_custom_call.1} parent=1 // pred_check
      _
    $region43: #{tpu_custom_call.1} parent=1 // pred_check_branch
      %1262 = sbr.rel (0) target = $region45
    $region44: #{tpu_custom_call.1} parent=1 // pred_region
      %s1264 = ssub.s32 32, 32
      %1265 = vsyncadd [#allocation4], %s1264
      %s1267 = sshll.u32 [#allocation10], 4
      %s1268 = int_to_ptr.vmem [resolvable:$true] %s1267
      %1270 = dma.vmem_to_hbm [thread:$0]  %s1268, 32, %s6, [#allocation4]
    $region45: #{tpu_custom_call.1} parent=1 // pred_fallthru
      _
    // Predicated region
    $region46: #{tpu_custom_call.1} parent=1 // pred_check
      _
    $region47: #{tpu_custom_call.1} parent=1 // pred_check_branch
      %1272 = sbr.rel (0) target = $region49
    $region48: #{tpu_custom_call.1} parent=1 // pred_region
      %1273 = dma.done [#allocation4], 32
    $region49: #{tpu_custom_call.1} parent=1 // pred_fallthru
      _
    %1274 = vsyncpa [#allocation3], 1
    %1275 = vsyncpa [#allocation6], 1
    %1276 = vsyncpa [#allocation9], 1
    %1277 = vsyncpa [#allocation4], 1

</llo_original>
